<compile_context>
chip_gen: v7x
topology: tpu7x:2x2x1
jax: 0.10.0
libtpu: 0.0.40
codegen_flags: <defaults>
</compile_context>

<pallas_src>
import jax
import jax.numpy as jnp
from jax.experimental import pallas as pl
from jax.experimental.pallas import tpu as pltpu


def _dc_kernel(xr_ref, xi_ref, yr_ref, yi_ref,
               fhl_ref, fhr_ref, fw2_ref, fw2g_ref, m_ref, m2_ref,
               outr_ref, outi_ref):
    """Full data-consistency update for ONE image.

    xr/xi/yr/yi : (H, W)   real / imag planes of X and Y_freq
    fhl, fhr    : (2H, H)  [Fh_r; Fh_i] and [-Fh_i; Fh_r]  (H-axis centered DFT)
    fw2         : (W, 2W)  [FwT_r | FwT_i]                 (W-axis centered DFT)
    fw2g        : (W, 2W)  [g*FwT_r | -g*FwT_i]            (gamma & final conj folded)
    m, m2       : (H, W)   mask and mask^2
    outr/outi   : (H, W)   real / imag planes of Ts
    """
    h, w = m_ref.shape
    f32 = jnp.float32

    # ---- forward DFT along H:  U = [Ur; Ui] = rows-stacked (Fh @ X) ---------
    u = (jnp.dot(fhl_ref[...], xr_ref[...], preferred_element_type=f32)
         + jnp.dot(fhr_ref[...], xi_ref[...], preferred_element_type=f32))

    # ---- forward DFT along W (real and imag products in one wide dot) -------
    pq = jnp.dot(u, fw2_ref[...], preferred_element_type=f32)       # (2H, 2W)
    kr = pq[:h, :w] - pq[h:, w:]                                     # Re fft2c(X)
    ki = pq[:h, w:] + pq[h:, :w]                                     # Im fft2c(X)

    # ---- conj(R) = M*conj(Y) - M^2*conj(K)   (masked, conjugated residual) --
    m = m_ref[...]
    m2 = m2_ref[...]
    crr = m * yr_ref[...] - m2 * kr
    cri = m2 * ki - m * yi_ref[...]

    # ---- inverse transform via  ifft2c(R) = conj(fft2c(conj(R)))  -----------
    v = (jnp.dot(fhl_ref[...], crr, preferred_element_type=f32)
         + jnp.dot(fhr_ref[...], cri, preferred_element_type=f32))
    pq2 = jnp.dot(v, fw2g_ref[...], preferred_element_type=f32)     # (2H, 2W)

    # ---- Ts = X + gamma * DC  (gamma and the conj sign live inside fw2g) ----
    outr_ref[...] = xr_ref[...] + pq2[:h, :w] + pq2[h:, w:]
    outi_ref[...] = xi_ref[...] + pq2[:h, w:] - pq2[h:, :w]


def _centered_dft_mat(n):
    """F such that F @ x == fft1c(x) (centered, orthonormal)."""
    eye = jnp.eye(n, dtype=jnp.complex64)
    F = jnp.fft.fftshift(
        jnp.fft.fft(jnp.fft.ifftshift(eye, axes=0), axis=0, norm="ortho"),
        axes=0)
    return F.astype(jnp.complex64)


def _vmem_limit_bytes():
    """Generation-aware VMEM limit: ~3/4 of the chip's physical capacity
    (96 MiB on v5e/v6e's 128 MiB VMEM, 48 MiB on v7x's 64 MiB per TensorCore)."""
    try:
        cap = int(pltpu.get_tpu_info().vmem_capacity_bytes)
    except Exception:  # info query only; never masks kernel errors
        cap = 64 * 1024 * 1024
    cap = max(cap, 32 * 1024 * 1024)
    return (cap * 3) // 4


def dc_layer_first(X, mask, Y_freq, gamma):
    """X, Y_freq: (B, C, H, W) complex64; mask: (H, W) real; gamma: scalar."""
    B, C, H, W = X.shape
    N = B * C

    # Raw real/imag planes (reshape is free; no [real|imag] repacking pass).
    xr = jnp.real(X).reshape(N * H, W).astype(jnp.float32)
    xi = jnp.imag(X).reshape(N * H, W).astype(jnp.float32)
    yr = jnp.real(Y_freq).reshape(N * H, W).astype(jnp.float32)
    yi = jnp.imag(Y_freq).reshape(N * H, W).astype(jnp.float32)

    m = mask.astype(jnp.float32).reshape(H, W)
    m2 = m * m

    # Forward centered orthonormal DFT constants only; the inverse transform is
    # obtained in-kernel from ifft2c(Z) = conj(fft2c(conj(Z))).
    Fh = _centered_dft_mat(H)
    Fw = _centered_dft_mat(W)
    fhr = jnp.real(Fh).astype(jnp.float32)
    fhi = jnp.imag(Fh).astype(jnp.float32)
    FHL = jnp.concatenate([fhr, fhi], axis=0)                 # (2H, H)
    FHR = jnp.concatenate([-fhi, fhr], axis=0)                # (2H, H)

    FwT = Fw.T
    fwtr = jnp.real(FwT).astype(jnp.float32)
    fwti = jnp.imag(FwT).astype(jnp.float32)
    FW2 = jnp.concatenate([fwtr, fwti], axis=1)               # (W, 2W)
    g = jnp.asarray(gamma, dtype=jnp.float32)
    FW2G = jnp.concatenate([g * fwtr, -g * fwti], axis=1)     # gamma & conj folded

    img_spec = pl.BlockSpec((H, W), lambda n: (n, 0))
    # Grid-invariant constants: block index never changes -> DMA'd exactly once.
    fh_spec = pl.BlockSpec((2 * H, H), lambda n: (0, 0))
    fw_spec = pl.BlockSpec((W, 2 * W), lambda n: (0, 0))
    m_spec = pl.BlockSpec((H, W), lambda n: (0, 0))

    out_struct = jax.ShapeDtypeStruct((N * H, W), jnp.float32)

    call = pl.pallas_call(
        _dc_kernel,
        out_shape=(out_struct, out_struct),
        grid=(N,),
        in_specs=[img_spec, img_spec, img_spec, img_spec,
                  fh_spec, fh_spec, fw_spec, fw_spec, m_spec, m_spec],
        out_specs=(img_spec, img_spec),
        compiler_params=pltpu.CompilerParams(
            dimension_semantics=("parallel",),
            vmem_limit_bytes=_vmem_limit_bytes()),
    )
    out_r, out_i = call(xr, xi, yr, yi, FHL, FHR, FW2, FW2G, m, m2)

    Ts = jax.lax.complex(out_r, out_i).astype(jnp.complex64)
    return Ts.reshape(B, C, H, W)


def _ref_dc_layer_first(X, mask, Y_freq, gamma):
    def fft2c(x):
        return jnp.fft.fftshift(
            jnp.fft.fft2(jnp.fft.ifftshift(x, axes=(-2, -1)), norm="ortho"),
            axes=(-2, -1))

    def ifft2c(x):
        return jnp.fft.fftshift(
            jnp.fft.ifft2(jnp.fft.ifftshift(x, axes=(-2, -1)), norm="ortho"),
            axes=(-2, -1))

    DC = ifft2c(mask * (Y_freq - mask * fft2c(X)))
    data_grad = (gamma * jnp.real(DC) + 1j * (gamma * jnp.imag(DC))).astype(jnp.complex64)
    return (X + data_grad).astype(jnp.complex64)


if __name__ == "__main__":
    key = jax.random.PRNGKey(0)
    B, C, H, W = 2, 4, 16, 16
    k1, k2, k3, k4, k5 = jax.random.split(key, 5)

    X = (jax.random.normal(k1, (B, C, H, W), dtype=jnp.float32)
         + 1j * jax.random.normal(k2, (B, C, H, W), dtype=jnp.float32)).astype(jnp.complex64)
    Y_freq = (jax.random.normal(k3, (B, C, H, W), dtype=jnp.float32)
              + 1j * jax.random.normal(k4, (B, C, H, W), dtype=jnp.float32)).astype(jnp.complex64)
    mask = (jax.random.uniform(k5, (H, W)) > 0.5).astype(jnp.float32)
    gamma = 0.7

    Ts = dc_layer_first(X, mask, Y_freq, gamma)
    Ts = jax.block_until_ready(Ts)

    ref = _ref_dc_layer_first(X, mask, Y_freq, gamma)
    assert Ts.shape == (B, C, H, W) and Ts.dtype == jnp.complex64
    assert jnp.allclose(Ts, ref, atol=1e-3, rtol=1e-3), "mismatch vs reference"

    print("KERNEL_OK")
</pallas_src>

<mosaic_0001>
module attributes {stable_mosaic.version = 11 : i64} {
  func.func @_dc_kernel(%arg0: i32, %arg1: memref<16x16xf32, #tpu.memory_space<vmem>>, %arg2: memref<16x16xf32, #tpu.memory_space<vmem>>, %arg3: memref<16x16xf32, #tpu.memory_space<vmem>>, %arg4: memref<16x16xf32, #tpu.memory_space<vmem>>, %arg5: memref<32x16xf32, #tpu.memory_space<vmem>>, %arg6: memref<32x16xf32, #tpu.memory_space<vmem>>, %arg7: memref<16x32xf32, #tpu.memory_space<vmem>>, %arg8: memref<16x32xf32, #tpu.memory_space<vmem>>, %arg9: memref<16x16xf32, #tpu.memory_space<vmem>>, %arg10: memref<16x16xf32, #tpu.memory_space<vmem>>, %arg11: memref<16x16xf32, #tpu.memory_space<vmem>>, %arg12: memref<16x16xf32, #tpu.memory_space<vmem>>) attributes {dimension_semantics = [#tpu.dimension_semantics<parallel>], iteration_bounds = array<i64: 8>, scalar_prefetch = 0 : i64, scratch_operands = 0 : i64, tpu.core_type = #tpu.core_type<tc>, window_params = [{transform_indices = @transform_0, window_bounds = array<i64: 16, 16>}, {transform_indices = @transform_1, window_bounds = array<i64: 16, 16>}, {transform_indices = @transform_2, window_bounds = array<i64: 16, 16>}, {transform_indices = @transform_3, window_bounds = array<i64: 16, 16>}, {pipeline_mode = #tpu.pipeline_mode<synchronous>, transform_indices = @transform_4, window_bounds = array<i64: 32, 16>}, {pipeline_mode = #tpu.pipeline_mode<synchronous>, transform_indices = @transform_5, window_bounds = array<i64: 32, 16>}, {pipeline_mode = #tpu.pipeline_mode<synchronous>, transform_indices = @transform_6, window_bounds = array<i64: 16, 32>}, {pipeline_mode = #tpu.pipeline_mode<synchronous>, transform_indices = @transform_7, window_bounds = array<i64: 16, 32>}, {pipeline_mode = #tpu.pipeline_mode<synchronous>, transform_indices = @transform_8, window_bounds = array<i64: 16, 16>}, {pipeline_mode = #tpu.pipeline_mode<synchronous>, transform_indices = @transform_9, window_bounds = array<i64: 16, 16>}, {transform_indices = @transform_10, window_bounds = array<i64: 16, 16>}, {transform_indices = @transform_11, window_bounds = array<i64: 16, 16>}]} {
    %c0 = arith.constant 0 : index
    %c0_0 = arith.constant 0 : index
    %0 = vector.load %arg5[%c0, %c0_0] : memref<32x16xf32, #tpu.memory_space<vmem>>, vector<32x16xf32>
    %c0_1 = arith.constant 0 : index
    %c0_2 = arith.constant 0 : index
    %1 = vector.load %arg1[%c0_1, %c0_2] : memref<16x16xf32, #tpu.memory_space<vmem>>, vector<16x16xf32>
    %cst = arith.constant dense<0.000000e+00> : vector<32x16xf32>
    %2 = tpu.matmul %0, %1, %cst {dimension_numbers = #tpu.dot_dimension_numbers<[1], [0], [0], [1], [0, 0, 1, 1], [], []>} : vector<32x16xf32>, vector<16x16xf32>, vector<32x16xf32> -> vector<32x16xf32>
    %c0_3 = arith.constant 0 : index
    %c0_4 = arith.constant 0 : index
    %3 = vector.load %arg6[%c0_3, %c0_4] : memref<32x16xf32, #tpu.memory_space<vmem>>, vector<32x16xf32>
    %c0_5 = arith.constant 0 : index
    %c0_6 = arith.constant 0 : index
    %4 = vector.load %arg2[%c0_5, %c0_6] : memref<16x16xf32, #tpu.memory_space<vmem>>, vector<16x16xf32>
    %cst_7 = arith.constant dense<0.000000e+00> : vector<32x16xf32>
    %5 = tpu.matmul %3, %4, %cst_7 {dimension_numbers = #tpu.dot_dimension_numbers<[1], [0], [0], [1], [0, 0, 1, 1], [], []>} : vector<32x16xf32>, vector<16x16xf32>, vector<32x16xf32> -> vector<32x16xf32>
    %6 = arith.addf %2, %5 : vector<32x16xf32>
    %c0_8 = arith.constant 0 : index
    %c0_9 = arith.constant 0 : index
    %7 = vector.load %arg7[%c0_8, %c0_9] : memref<16x32xf32, #tpu.memory_space<vmem>>, vector<16x32xf32>
    %cst_10 = arith.constant dense<0.000000e+00> : vector<32x32xf32>
    %8 = tpu.matmul %6, %7, %cst_10 {dimension_numbers = #tpu.dot_dimension_numbers<[1], [0], [0], [1], [0, 0, 1, 1], [], []>} : vector<32x16xf32>, vector<16x32xf32>, vector<32x32xf32> -> vector<32x32xf32>
    %9 = vector.extract_strided_slice %8 {offsets = [0, 0], sizes = [16, 16], strides = [1, 1]} : vector<32x32xf32> to vector<16x16xf32>
    %10 = vector.extract_strided_slice %8 {offsets = [16, 16], sizes = [16, 16], strides = [1, 1]} : vector<32x32xf32> to vector<16x16xf32>
    %11 = arith.subf %9, %10 : vector<16x16xf32>
    %12 = vector.extract_strided_slice %8 {offsets = [0, 16], sizes = [16, 16], strides = [1, 1]} : vector<32x32xf32> to vector<16x16xf32>
    %13 = vector.extract_strided_slice %8 {offsets = [16, 0], sizes = [16, 16], strides = [1, 1]} : vector<32x32xf32> to vector<16x16xf32>
    %14 = arith.addf %12, %13 : vector<16x16xf32>
    %c0_11 = arith.constant 0 : index
    %c0_12 = arith.constant 0 : index
    %15 = vector.load %arg9[%c0_11, %c0_12] : memref<16x16xf32, #tpu.memory_space<vmem>>, vector<16x16xf32>
    %c0_13 = arith.constant 0 : index
    %c0_14 = arith.constant 0 : index
    %16 = vector.load %arg10[%c0_13, %c0_14] : memref<16x16xf32, #tpu.memory_space<vmem>>, vector<16x16xf32>
    %c0_15 = arith.constant 0 : index
    %c0_16 = arith.constant 0 : index
    %17 = vector.load %arg3[%c0_15, %c0_16] : memref<16x16xf32, #tpu.memory_space<vmem>>, vector<16x16xf32>
    %18 = arith.mulf %15, %17 : vector<16x16xf32>
    %19 = arith.mulf %16, %11 : vector<16x16xf32>
    %20 = arith.subf %18, %19 : vector<16x16xf32>
    %21 = arith.mulf %16, %14 : vector<16x16xf32>
    %c0_17 = arith.constant 0 : index
    %c0_18 = arith.constant 0 : index
    %22 = vector.load %arg4[%c0_17, %c0_18] : memref<16x16xf32, #tpu.memory_space<vmem>>, vector<16x16xf32>
    %23 = arith.mulf %15, %22 : vector<16x16xf32>
    %24 = arith.subf %21, %23 : vector<16x16xf32>
    %c0_19 = arith.constant 0 : index
    %c0_20 = arith.constant 0 : index
    %25 = vector.load %arg5[%c0_19, %c0_20] : memref<32x16xf32, #tpu.memory_space<vmem>>, vector<32x16xf32>
    %cst_21 = arith.constant dense<0.000000e+00> : vector<32x16xf32>
    %26 = tpu.matmul %25, %20, %cst_21 {dimension_numbers = #tpu.dot_dimension_numbers<[1], [0], [0], [1], [0, 0, 1, 1], [], []>} : vector<32x16xf32>, vector<16x16xf32>, vector<32x16xf32> -> vector<32x16xf32>
    %c0_22 = arith.constant 0 : index
    %c0_23 = arith.constant 0 : index
    %27 = vector.load %arg6[%c0_22, %c0_23] : memref<32x16xf32, #tpu.memory_space<vmem>>, vector<32x16xf32>
    %cst_24 = arith.constant dense<0.000000e+00> : vector<32x16xf32>
    %28 = tpu.matmul %27, %24, %cst_24 {dimension_numbers = #tpu.dot_dimension_numbers<[1], [0], [0], [1], [0, 0, 1, 1], [], []>} : vector<32x16xf32>, vector<16x16xf32>, vector<32x16xf32> -> vector<32x16xf32>
    %29 = arith.addf %26, %28 : vector<32x16xf32>
    %c0_25 = arith.constant 0 : index
    %c0_26 = arith.constant 0 : index
    %30 = vector.load %arg8[%c0_25, %c0_26] : memref<16x32xf32, #tpu.memory_space<vmem>>, vector<16x32xf32>
    %cst_27 = arith.constant dense<0.000000e+00> : vector<32x32xf32>
    %31 = tpu.matmul %29, %30, %cst_27 {dimension_numbers = #tpu.dot_dimension_numbers<[1], [0], [0], [1], [0, 0, 1, 1], [], []>} : vector<32x16xf32>, vector<16x32xf32>, vector<32x32xf32> -> vector<32x32xf32>
    %c0_28 = arith.constant 0 : index
    %c0_29 = arith.constant 0 : index
    %32 = vector.load %arg1[%c0_28, %c0_29] : memref<16x16xf32, #tpu.memory_space<vmem>>, vector<16x16xf32>
    %33 = vector.extract_strided_slice %31 {offsets = [0, 0], sizes = [16, 16], strides = [1, 1]} : vector<32x32xf32> to vector<16x16xf32>
    %34 = arith.addf %32, %33 : vector<16x16xf32>
    %35 = vector.extract_strided_slice %31 {offsets = [16, 16], sizes = [16, 16], strides = [1, 1]} : vector<32x32xf32> to vector<16x16xf32>
    %36 = arith.addf %34, %35 : vector<16x16xf32>
    %c0_30 = arith.constant 0 : index
    %c0_31 = arith.constant 0 : index
    %37 = vector.load %arg11[%c0_30, %c0_31] : memref<16x16xf32, #tpu.memory_space<vmem>>, vector<16x16xf32>
    tpu.vector_store %arg11[%c0_30, %c0_31], %36 {strides = array<i32>} : memref<16x16xf32, #tpu.memory_space<vmem>>, vector<16x16xf32>,
    %c0_32 = arith.constant 0 : index
    %c0_33 = arith.constant 0 : index
    %38 = vector.load %arg2[%c0_32, %c0_33] : memref<16x16xf32, #tpu.memory_space<vmem>>, vector<16x16xf32>
    %39 = vector.extract_strided_slice %31 {offsets = [0, 16], sizes = [16, 16], strides = [1, 1]} : vector<32x32xf32> to vector<16x16xf32>
    %40 = arith.addf %38, %39 : vector<16x16xf32>
    %41 = vector.extract_strided_slice %31 {offsets = [16, 0], sizes = [16, 16], strides = [1, 1]} : vector<32x32xf32> to vector<16x16xf32>
    %42 = arith.subf %40, %41 : vector<16x16xf32>
    %c0_34 = arith.constant 0 : index
    %c0_35 = arith.constant 0 : index
    %43 = vector.load %arg12[%c0_34, %c0_35] : memref<16x16xf32, #tpu.memory_space<vmem>>, vector<16x16xf32>
    tpu.vector_store %arg12[%c0_34, %c0_35], %42 {strides = array<i32>} : memref<16x16xf32, #tpu.memory_space<vmem>>, vector<16x16xf32>,
    return
  }
  func.func @transform_0(%arg0: i32) -> (i32, i32) {
    %c0_i32 = arith.constant 0 : i32
    %c0_i32_0 = arith.constant 0 : i32
    return %arg0, %c0_i32 : i32, i32
  }
  func.func @transform_1(%arg0: i32) -> (i32, i32) {
    %c0_i32 = arith.constant 0 : i32
    %c0_i32_0 = arith.constant 0 : i32
    return %arg0, %c0_i32 : i32, i32
  }
  func.func @transform_2(%arg0: i32) -> (i32, i32) {
    %c0_i32 = arith.constant 0 : i32
    %c0_i32_0 = arith.constant 0 : i32
    return %arg0, %c0_i32 : i32, i32
  }
  func.func @transform_3(%arg0: i32) -> (i32, i32) {
    %c0_i32 = arith.constant 0 : i32
    %c0_i32_0 = arith.constant 0 : i32
    return %arg0, %c0_i32 : i32, i32
  }
  func.func @transform_4(%arg0: i32) -> (i32, i32) {
    %c0_i32 = arith.constant 0 : i32
    %c0_i32_0 = arith.constant 0 : i32
    %c0_i32_1 = arith.constant 0 : i32
    return %c0_i32, %c0_i32_0 : i32, i32
  }
  func.func @transform_5(%arg0: i32) -> (i32, i32) {
    %c0_i32 = arith.constant 0 : i32
    %c0_i32_0 = arith.constant 0 : i32
    %c0_i32_1 = arith.constant 0 : i32
    return %c0_i32, %c0_i32_0 : i32, i32
  }
  func.func @transform_6(%arg0: i32) -> (i32, i32) {
    %c0_i32 = arith.constant 0 : i32
    %c0_i32_0 = arith.constant 0 : i32
    %c0_i32_1 = arith.constant 0 : i32
    return %c0_i32, %c0_i32_0 : i32, i32
  }
  func.func @transform_7(%arg0: i32) -> (i32, i32) {
    %c0_i32 = arith.constant 0 : i32
    %c0_i32_0 = arith.constant 0 : i32
    %c0_i32_1 = arith.constant 0 : i32
    return %c0_i32, %c0_i32_0 : i32, i32
  }
  func.func @transform_8(%arg0: i32) -> (i32, i32) {
    %c0_i32 = arith.constant 0 : i32
    %c0_i32_0 = arith.constant 0 : i32
    %c0_i32_1 = arith.constant 0 : i32
    return %c0_i32, %c0_i32_0 : i32, i32
  }
  func.func @transform_9(%arg0: i32) -> (i32, i32) {
    %c0_i32 = arith.constant 0 : i32
    %c0_i32_0 = arith.constant 0 : i32
    %c0_i32_1 = arith.constant 0 : i32
    return %c0_i32, %c0_i32_0 : i32, i32
  }
  func.func @transform_10(%arg0: i32) -> (i32, i32) {
    %c0_i32 = arith.constant 0 : i32
    %c0_i32_0 = arith.constant 0 : i32
    return %arg0, %c0_i32 : i32, i32
  }
  func.func @transform_11(%arg0: i32) -> (i32, i32) {
    %c0_i32 = arith.constant 0 : i32
    %c0_i32_0 = arith.constant 0 : i32
    return %arg0, %c0_i32 : i32, i32
  }
}

</mosaic_0001>

<llo_original>
// kernel: tpu_custom_call.1
$region0: #{tpu_custom_call.1}
  #allocation0 [shape = 'u32[]', space=smem, size = 0x4, offset = 0x4, fixed_abs, tag = 'smem constant byte address 0x4 - core index']
  #allocation1 [shape = 'u32[144,128]{1,0:T(1,128)}', space=vmem, size = 0x12000, scoped, tag = 'internal scratch']
  %s0 = inlined_call_operand.vmem [shape: f32[128,16], index: 0, kind: input, shape index: {}]
  %s1 = inlined_call_operand.vmem [shape: f32[128,16], index: 1, kind: input, shape index: {}]
  %s2 = inlined_call_operand.vmem [shape: f32[128,16], index: 2, kind: input, shape index: {}]
  %s3 = inlined_call_operand.vmem [shape: f32[128,16], index: 3, kind: input, shape index: {}]
  %s4 = inlined_call_operand.vmem [shape: f32[32,16], index: 4, kind: input, shape index: {}]
  %s5 = inlined_call_operand.vmem [shape: f32[32,16], index: 5, kind: input, shape index: {}]
  %s6 = inlined_call_operand.vmem [shape: f32[16,32], index: 6, kind: input, shape index: {}]
  %s7 = inlined_call_operand.vmem [shape: f32[16,32], index: 7, kind: input, shape index: {}]
  %s8 = inlined_call_operand.vmem [shape: f32[16,16], index: 8, kind: input, shape index: {}]
  %s9 = inlined_call_operand.vmem [shape: f32[16,16], index: 9, kind: input, shape index: {}]
  %s10 = inlined_call_operand.vmem [shape: f32[128,16], index: 10, kind: output, shape index: {0}]
  %s11 = inlined_call_operand.vmem [shape: f32[128,16], index: 11, kind: output, shape index: {1}]
  %12 = xla_tuple %s10, %s11
  %s13 = sld [smem:[#allocation0]]
  $region81: #{tpu_custom_call.1} parent=0
    _
  %s15 = ssub.s32 1, %s13
  %s16 = scalar_select 0, %s15, %s13
  loop: start=0, step=1, limit=10
  $region2: #{tpu_custom_call.1} parent=0 // loop_pre_header
    _
  $region3: #{tpu_custom_call.1} parent=0 // loop_header
    %s18 = sphi 0, %s22
    %p19 = scmp.ge.s32.totalorder %s18, 10
    %s28 = sphi 0, %s30
    %s31 = sphi 0, %s28
    %s32 = sphi 0, %s31
    %s48 = sphi 0, %s32
    %s54 = sphi 0, %s56
    %s57 = sphi 0, %s54
    %s58 = sphi 0, %s57
    %s74 = sphi 0, %s58
    %s80 = sphi 0, %s82
    %s83 = sphi 0, %s80
    %s84 = sphi 0, %s83
    %s100 = sphi 0, %s84
    %s106 = sphi 0, %s108
    %s109 = sphi 0, %s106
    %s110 = sphi 0, %s109
    %s126 = sphi 0, %s110
    %s130 = sphi 0, %s130
    %s132 = sphi 0, %s130
    %s133 = sphi 0, %s132
    %s147 = sphi 0, %s133
    %s151 = sphi 0, %s151
    %s153 = sphi 0, %s151
    %s154 = sphi 0, %s153
    %s168 = sphi 0, %s154
    %s172 = sphi 0, %s172
    %s174 = sphi 0, %s172
    %s175 = sphi 0, %s174
    %s189 = sphi 0, %s175
    %s193 = sphi 0, %s193
    %s195 = sphi 0, %s193
    %s196 = sphi 0, %s195
    %s210 = sphi 0, %s196
    %s214 = sphi 0, %s214
    %s216 = sphi 0, %s214
    %s217 = sphi 0, %s216
    %s231 = sphi 0, %s217
    %s235 = sphi 0, %s235
    %s237 = sphi 0, %s235
    %s238 = sphi 0, %s237
    %s252 = sphi 0, %s238
    %s258 = sphi 0, %s260
    %s261 = sphi 0, %s258
    %s262 = sphi 0, %s261
    %s278 = sphi 0, %s262
    %s284 = sphi 0, %s286
    %s287 = sphi 0, %s284
    %s288 = sphi 0, %s287
    %s304 = sphi 0, %s288
  $region4: #{tpu_custom_call.1} parent=0 // loop_header_branch
    %21 = sbr.rel (%p19) target = $region8
  $region5: #{tpu_custom_call.1} parent=0 // loop_body
    %s23 = ssub.s32 %s18, 1
    %s24 = ssub.s32 %s18, 2
    %s25 = sadd.s32 %s18, 1
    %s26 = ssub.s32 %s18, %s25
    %p27 = scmp.eq.s32.totalorder %s26, 0
    %s29 = sadd.s32 %s28, 1
    %s30 = scalar_select %p27, %s28, %s29
    %p33 = pneg %p27
    %p34 = scmp.eq.s32.totalorder %s18, 7
    %p35 = por %p33, %p34
    %p36 = scmp.ne.s32.totalorder %s28, %s31
    %p37 = scmp.eq.s32.totalorder %s18, 0
    %p38 = por %p36, %p37
    %p39 = scmp.ne.s32.totalorder %s28, %s31
    %p40 = scmp.eq.s32.totalorder %s23, 7
    %p41 = por %p39, %p40
    %p42 = scmp.ne.s32.totalorder %s31, %s32
    %p43 = scmp.eq.s32.totalorder %s23, 0
    %p44 = por %p42, %p43
    %p45 = scmp.ne.s32.totalorder %s31, %s32
    %p46 = scmp.eq.s32.totalorder %s24, 7
    %p47 = por %p45, %p46
    %p49 = scmp.ne.s32.totalorder %s32, %s48
    %p50 = scmp.eq.s32.totalorder %s24, 0
    %p51 = por %p49, %p50
    %s52 = ssub.s32 %s18, %s25
    %p53 = scmp.eq.s32.totalorder %s52, 0
    %s55 = sadd.s32 %s54, 1
    %s56 = scalar_select %p53, %s54, %s55
    %p59 = pneg %p53
    %p60 = scmp.eq.s32.totalorder %s18, 7
    %p61 = por %p59, %p60
    %p62 = scmp.ne.s32.totalorder %s54, %s57
    %p63 = scmp.eq.s32.totalorder %s18, 0
    %p64 = por %p62, %p63
    %p65 = scmp.ne.s32.totalorder %s54, %s57
    %p66 = scmp.eq.s32.totalorder %s23, 7
    %p67 = por %p65, %p66
    %p68 = scmp.ne.s32.totalorder %s57, %s58
    %p69 = scmp.eq.s32.totalorder %s23, 0
    %p70 = por %p68, %p69
    %p71 = scmp.ne.s32.totalorder %s57, %s58
    %p72 = scmp.eq.s32.totalorder %s24, 7
    %p73 = por %p71, %p72
    %p75 = scmp.ne.s32.totalorder %s58, %s74
    %p76 = scmp.eq.s32.totalorder %s24, 0
    %p77 = por %p75, %p76
    %s78 = ssub.s32 %s18, %s25
    %p79 = scmp.eq.s32.totalorder %s78, 0
    %s81 = sadd.s32 %s80, 1
    %s82 = scalar_select %p79, %s80, %s81
    %p85 = pneg %p79
    %p86 = scmp.eq.s32.totalorder %s18, 7
    %p87 = por %p85, %p86
    %p88 = scmp.ne.s32.totalorder %s80, %s83
    %p89 = scmp.eq.s32.totalorder %s18, 0
    %p90 = por %p88, %p89
    %p91 = scmp.ne.s32.totalorder %s80, %s83
    %p92 = scmp.eq.s32.totalorder %s23, 7
    %p93 = por %p91, %p92
    %p94 = scmp.ne.s32.totalorder %s83, %s84
    %p95 = scmp.eq.s32.totalorder %s23, 0
    %p96 = por %p94, %p95
    %p97 = scmp.ne.s32.totalorder %s83, %s84
    %p98 = scmp.eq.s32.totalorder %s24, 7
    %p99 = por %p97, %p98
    %p101 = scmp.ne.s32.totalorder %s84, %s100
    %p102 = scmp.eq.s32.totalorder %s24, 0
    %p103 = por %p101, %p102
    %s104 = ssub.s32 %s18, %s25
    %p105 = scmp.eq.s32.totalorder %s104, 0
    %s107 = sadd.s32 %s106, 1
    %s108 = scalar_select %p105, %s106, %s107
    %p111 = pneg %p105
    %p112 = scmp.eq.s32.totalorder %s18, 7
    %p113 = por %p111, %p112
    %p114 = scmp.ne.s32.totalorder %s106, %s109
    %p115 = scmp.eq.s32.totalorder %s18, 0
    %p116 = por %p114, %p115
    %p117 = scmp.ne.s32.totalorder %s106, %s109
    %p118 = scmp.eq.s32.totalorder %s23, 7
    %p119 = por %p117, %p118
    %p120 = scmp.ne.s32.totalorder %s109, %s110
    %p121 = scmp.eq.s32.totalorder %s23, 0
    %p122 = por %p120, %p121
    %p123 = scmp.ne.s32.totalorder %s109, %s110
    %p124 = scmp.eq.s32.totalorder %s24, 7
    %p125 = por %p123, %p124
    %p127 = scmp.ne.s32.totalorder %s110, %s126
    %p128 = scmp.eq.s32.totalorder %s24, 0
    %p129 = por %p127, %p128
    %s131 = sadd.s32 %s130, 1
    %p134 = scmp.eq.s32.totalorder %s18, 7
    %p135 = scmp.ne.s32.totalorder %s130, %s132
    %p136 = scmp.eq.s32.totalorder %s18, 0
    %p137 = por %p135, %p136
    %p138 = scmp.ne.s32.totalorder %s130, %s132
    %p139 = scmp.eq.s32.totalorder %s23, 7
    %p140 = por %p138, %p139
    %p141 = scmp.ne.s32.totalorder %s132, %s133
    %p142 = scmp.eq.s32.totalorder %s23, 0
    %p143 = por %p141, %p142
    %p144 = scmp.ne.s32.totalorder %s132, %s133
    %p145 = scmp.eq.s32.totalorder %s24, 7
    %p146 = por %p144, %p145
    %p148 = scmp.ne.s32.totalorder %s133, %s147
    %p149 = scmp.eq.s32.totalorder %s24, 0
    %p150 = por %p148, %p149
    %s152 = sadd.s32 %s151, 1
    %p155 = scmp.eq.s32.totalorder %s18, 7
    %p156 = scmp.ne.s32.totalorder %s151, %s153
    %p157 = scmp.eq.s32.totalorder %s18, 0
    %p158 = por %p156, %p157
    %p159 = scmp.ne.s32.totalorder %s151, %s153
    %p160 = scmp.eq.s32.totalorder %s23, 7
    %p161 = por %p159, %p160
    %p162 = scmp.ne.s32.totalorder %s153, %s154
    %p163 = scmp.eq.s32.totalorder %s23, 0
    %p164 = por %p162, %p163
    %p165 = scmp.ne.s32.totalorder %s153, %s154
    %p166 = scmp.eq.s32.totalorder %s24, 7
    %p167 = por %p165, %p166
    %p169 = scmp.ne.s32.totalorder %s154, %s168
    %p170 = scmp.eq.s32.totalorder %s24, 0
    %p171 = por %p169, %p170
    %s173 = sadd.s32 %s172, 1
    %p176 = scmp.eq.s32.totalorder %s18, 7
    %p177 = scmp.ne.s32.totalorder %s172, %s174
    %p178 = scmp.eq.s32.totalorder %s18, 0
    %p179 = por %p177, %p178
    %p180 = scmp.ne.s32.totalorder %s172, %s174
    %p181 = scmp.eq.s32.totalorder %s23, 7
    %p182 = por %p180, %p181
    %p183 = scmp.ne.s32.totalorder %s174, %s175
    %p184 = scmp.eq.s32.totalorder %s23, 0
    %p185 = por %p183, %p184
    %p186 = scmp.ne.s32.totalorder %s174, %s175
    %p187 = scmp.eq.s32.totalorder %s24, 7
    %p188 = por %p186, %p187
    %p190 = scmp.ne.s32.totalorder %s175, %s189
    %p191 = scmp.eq.s32.totalorder %s24, 0
    %p192 = por %p190, %p191
    %s194 = sadd.s32 %s193, 1
    %p197 = scmp.eq.s32.totalorder %s18, 7
    %p198 = scmp.ne.s32.totalorder %s193, %s195
    %p199 = scmp.eq.s32.totalorder %s18, 0
    %p200 = por %p198, %p199
    %p201 = scmp.ne.s32.totalorder %s193, %s195
    %p202 = scmp.eq.s32.totalorder %s23, 7
    %p203 = por %p201, %p202
    %p204 = scmp.ne.s32.totalorder %s195, %s196
    %p205 = scmp.eq.s32.totalorder %s23, 0
    %p206 = por %p204, %p205
    %p207 = scmp.ne.s32.totalorder %s195, %s196
    %p208 = scmp.eq.s32.totalorder %s24, 7
    %p209 = por %p207, %p208
    %p211 = scmp.ne.s32.totalorder %s196, %s210
    %p212 = scmp.eq.s32.totalorder %s24, 0
    %p213 = por %p211, %p212
    %s215 = sadd.s32 %s214, 1
    %p218 = scmp.eq.s32.totalorder %s18, 7
    %p219 = scmp.ne.s32.totalorder %s214, %s216
    %p220 = scmp.eq.s32.totalorder %s18, 0
    %p221 = por %p219, %p220
    %p222 = scmp.ne.s32.totalorder %s214, %s216
    %p223 = scmp.eq.s32.totalorder %s23, 7
    %p224 = por %p222, %p223
    %p225 = scmp.ne.s32.totalorder %s216, %s217
    %p226 = scmp.eq.s32.totalorder %s23, 0
    %p227 = por %p225, %p226
    %p228 = scmp.ne.s32.totalorder %s216, %s217
    %p229 = scmp.eq.s32.totalorder %s24, 7
    %p230 = por %p228, %p229
    %p232 = scmp.ne.s32.totalorder %s217, %s231
    %p233 = scmp.eq.s32.totalorder %s24, 0
    %p234 = por %p232, %p233
    %s236 = sadd.s32 %s235, 1
    %p239 = scmp.eq.s32.totalorder %s18, 7
    %p240 = scmp.ne.s32.totalorder %s235, %s237
    %p241 = scmp.eq.s32.totalorder %s18, 0
    %p242 = por %p240, %p241
    %p243 = scmp.ne.s32.totalorder %s235, %s237
    %p244 = scmp.eq.s32.totalorder %s23, 7
    %p245 = por %p243, %p244
    %p246 = scmp.ne.s32.totalorder %s237, %s238
    %p247 = scmp.eq.s32.totalorder %s23, 0
    %p248 = por %p246, %p247
    %p249 = scmp.ne.s32.totalorder %s237, %s238
    %p250 = scmp.eq.s32.totalorder %s24, 7
    %p251 = por %p249, %p250
    %p253 = scmp.ne.s32.totalorder %s238, %s252
    %p254 = scmp.eq.s32.totalorder %s24, 0
    %p255 = por %p253, %p254
    %s256 = ssub.s32 %s18, %s25
    %p257 = scmp.eq.s32.totalorder %s256, 0
    %s259 = sadd.s32 %s258, 1
    %s260 = scalar_select %p257, %s258, %s259
    %p263 = pneg %p257
    %p264 = scmp.eq.s32.totalorder %s18, 7
    %p265 = por %p263, %p264
    %p266 = scmp.ne.s32.totalorder %s258, %s261
    %p267 = scmp.eq.s32.totalorder %s18, 0
    %p268 = por %p266, %p267
    %p269 = scmp.ne.s32.totalorder %s258, %s261
    %p270 = scmp.eq.s32.totalorder %s23, 7
    %p271 = por %p269, %p270
    %p272 = scmp.ne.s32.totalorder %s261, %s262
    %p273 = scmp.eq.s32.totalorder %s23, 0
    %p274 = por %p272, %p273
    %p275 = scmp.ne.s32.totalorder %s261, %s262
    %p276 = scmp.eq.s32.totalorder %s24, 7
    %p277 = por %p275, %p276
    %p279 = scmp.ne.s32.totalorder %s262, %s278
    %p280 = scmp.eq.s32.totalorder %s24, 0
    %p281 = por %p279, %p280
    %s282 = ssub.s32 %s18, %s25
    %p283 = scmp.eq.s32.totalorder %s282, 0
    %s285 = sadd.s32 %s284, 1
    %s286 = scalar_select %p283, %s284, %s285
    %p289 = pneg %p283
    %p290 = scmp.eq.s32.totalorder %s18, 7
    %p291 = por %p289, %p290
    %p292 = scmp.ne.s32.totalorder %s284, %s287
    %p293 = scmp.eq.s32.totalorder %s18, 0
    %p294 = por %p292, %p293
    %p295 = scmp.ne.s32.totalorder %s284, %s287
    %p296 = scmp.eq.s32.totalorder %s23, 7
    %p297 = por %p295, %p296
    %p298 = scmp.ne.s32.totalorder %s287, %s288
    %p299 = scmp.eq.s32.totalorder %s23, 0
    %p300 = por %p298, %p299
    %p301 = scmp.ne.s32.totalorder %s287, %s288
    %p302 = scmp.eq.s32.totalorder %s24, 7
    %p303 = por %p301, %p302
    %p305 = scmp.ne.s32.totalorder %s288, %s304
    %p306 = scmp.eq.s32.totalorder %s24, 0
    %p307 = por %p305, %p306
    %p308 = scmp.le.s32.totalorder 1, %s18
    %p309 = scmp.lt.s32.totalorder %s18, 9
    %p310 = pnand %p308, %p309
    %p311 = pneg %p310
    // Predicated region
    $region9: #{tpu_custom_call.1} parent=5 // pred_check
      _
    $region10: #{tpu_custom_call.1} parent=5 // pred_check_branch
      %313 = sbr.rel (%p310) target = $region12
    $region11: #{tpu_custom_call.1} parent=5 // pred_region
      %s314 = ssub.s32 %s18, 1
      // Predicated region
      $region13: #{tpu_custom_call.1} parent=11 // pred_check
        %p315 = pneg %p143
      $region14: #{tpu_custom_call.1} parent=11 // pred_check_branch
        %317 = sbr.rel (%p315) target = $region16
      $region15: #{tpu_custom_call.1} parent=11 // pred_region
        _
      $region16: #{tpu_custom_call.1} parent=11 // pred_fallthru
        _
      // Predicated region
      $region17: #{tpu_custom_call.1} parent=11 // pred_check
        %p318 = pneg %p164
      $region18: #{tpu_custom_call.1} parent=11 // pred_check_branch
        %320 = sbr.rel (%p318) target = $region20
      $region19: #{tpu_custom_call.1} parent=11 // pred_region
        _
      $region20: #{tpu_custom_call.1} parent=11 // pred_fallthru
        _
      // Predicated region
      $region21: #{tpu_custom_call.1} parent=11 // pred_check
        %p321 = pneg %p185
      $region22: #{tpu_custom_call.1} parent=11 // pred_check_branch
        %323 = sbr.rel (%p321) target = $region24
      $region23: #{tpu_custom_call.1} parent=11 // pred_region
        _
      $region24: #{tpu_custom_call.1} parent=11 // pred_fallthru
        _
      // Predicated region
      $region25: #{tpu_custom_call.1} parent=11 // pred_check
        %p324 = pneg %p206
      $region26: #{tpu_custom_call.1} parent=11 // pred_check_branch
        %326 = sbr.rel (%p324) target = $region28
      $region27: #{tpu_custom_call.1} parent=11 // pred_region
        _
      $region28: #{tpu_custom_call.1} parent=11 // pred_fallthru
        _
      // Predicated region
      $region29: #{tpu_custom_call.1} parent=11 // pred_check
        %p327 = pneg %p227
      $region30: #{tpu_custom_call.1} parent=11 // pred_check_branch
        %329 = sbr.rel (%p327) target = $region32
      $region31: #{tpu_custom_call.1} parent=11 // pred_region
        _
      $region32: #{tpu_custom_call.1} parent=11 // pred_fallthru
        _
      // Predicated region
      $region33: #{tpu_custom_call.1} parent=11 // pred_check
        %p330 = pneg %p248
      $region34: #{tpu_custom_call.1} parent=11 // pred_check_branch
        %332 = sbr.rel (%p330) target = $region36
      $region35: #{tpu_custom_call.1} parent=11 // pred_region
        _
      $region36: #{tpu_custom_call.1} parent=11 // pred_fallthru
        _
    $region12: #{tpu_custom_call.1} parent=5 // pred_fallthru
      _
    %p333 = scmp.lt.s32.totalorder %s18, 8
    // Predicated region
    $region37: #{tpu_custom_call.1} parent=5 // pred_check
      %p334 = pneg %p333
    $region38: #{tpu_custom_call.1} parent=5 // pred_check_branch
      %336 = sbr.rel (%p334) target = $region40
    $region39: #{tpu_custom_call.1} parent=5 // pred_region
      // Predicated region
      $region41: #{tpu_custom_call.1} parent=39 // pred_check
        %p337 = pneg %p38
      $region42: #{tpu_custom_call.1} parent=39 // pred_check_branch
        %339 = sbr.rel (%p337) target = $region44
      $region43: #{tpu_custom_call.1} parent=39 // pred_region
        %s340 = smul.u32 2, %s18
        %p341 = scmp.lt.s32.totalorder %s340, 15
        %s342 = scalar_select %p341, %s340, 15
        %s343 = smul.addr %s342, 8
        %s344 = scalar_lea.vmem %s0, %s343
        %s345 = smul.u32 2, %s18
      $region44: #{tpu_custom_call.1} parent=39 // pred_fallthru
        _
      // Predicated region
      $region45: #{tpu_custom_call.1} parent=39 // pred_check
        %p346 = pneg %p64
      $region46: #{tpu_custom_call.1} parent=39 // pred_check_branch
        %348 = sbr.rel (%p346) target = $region48
      $region47: #{tpu_custom_call.1} parent=39 // pred_region
        %s349 = smul.u32 2, %s18
        %p350 = scmp.lt.s32.totalorder %s349, 15
        %s351 = scalar_select %p350, %s349, 15
        %s352 = smul.addr %s351, 8
        %s353 = scalar_lea.vmem %s1, %s352
        %s354 = smul.u32 2, %s18
      $region48: #{tpu_custom_call.1} parent=39 // pred_fallthru
        _
      // Predicated region
      $region49: #{tpu_custom_call.1} parent=39 // pred_check
        %p355 = pneg %p90
      $region50: #{tpu_custom_call.1} parent=39 // pred_check_branch
        %357 = sbr.rel (%p355) target = $region52
      $region51: #{tpu_custom_call.1} parent=39 // pred_region
        %s358 = smul.u32 2, %s18
        %p359 = scmp.lt.s32.totalorder %s358, 15
        %s360 = scalar_select %p359, %s358, 15
        %s361 = smul.addr %s360, 8
        %s362 = scalar_lea.vmem %s2, %s361
        %s363 = smul.u32 2, %s18
      $region52: #{tpu_custom_call.1} parent=39 // pred_fallthru
        _
      // Predicated region
      $region53: #{tpu_custom_call.1} parent=39 // pred_check
        %p364 = pneg %p116
      $region54: #{tpu_custom_call.1} parent=39 // pred_check_branch
        %366 = sbr.rel (%p364) target = $region56
      $region55: #{tpu_custom_call.1} parent=39 // pred_region
        %s367 = smul.u32 2, %s18
        %p368 = scmp.lt.s32.totalorder %s367, 15
        %s369 = scalar_select %p368, %s367, 15
        %s370 = smul.addr %s369, 8
        %s371 = scalar_lea.vmem %s3, %s370
        %s372 = smul.u32 2, %s18
      $region56: #{tpu_custom_call.1} parent=39 // pred_fallthru
        _
    $region40: #{tpu_custom_call.1} parent=5 // pred_fallthru
      _
    %p373 = scmp.le.s32.totalorder 1, %s18
    %p374 = scmp.lt.s32.totalorder %s18, 9
    %p375 = pnand %p373, %p374
    %p376 = pneg %p375
    // Predicated region
    $region57: #{tpu_custom_call.1} parent=5 // pred_check
      _
    $region58: #{tpu_custom_call.1} parent=5 // pred_check_branch
      %378 = sbr.rel (%p375) target = $region60
    $region59: #{tpu_custom_call.1} parent=5 // pred_region
      %s379 = ssub.s32 %s18, 1
      %s380 = smul.u32 2, %s23
      %p381 = scmp.lt.s32.totalorder %s380, 15
      %s382 = scalar_select %p381, %s380, 15
      %s383 = smul.addr %s382, 8
      %s384 = scalar_lea.vmem %s0, %s383
      %p385 = pneg %p44
      %p386 = pneg %p41
      %s387 = smul.u32 2, %s23
      %p388 = scmp.lt.s32.totalorder %s387, 15
      %s389 = scalar_select %p388, %s387, 15
      %s390 = smul.addr %s389, 8
      %s391 = scalar_lea.vmem %s1, %s390
      %p392 = pneg %p70
      %p393 = pneg %p67
      %s394 = smul.u32 2, %s23
      %p395 = scmp.lt.s32.totalorder %s394, 15
      %s396 = scalar_select %p395, %s394, 15
      %s397 = smul.addr %s396, 8
      %s398 = scalar_lea.vmem %s2, %s397
      %p399 = pneg %p96
      %p400 = pneg %p93
      %s401 = smul.u32 2, %s23
      %p402 = scmp.lt.s32.totalorder %s401, 15
      %s403 = scalar_select %p402, %s401, 15
      %s404 = smul.addr %s403, 8
      %s405 = scalar_lea.vmem %s3, %s404
      %p406 = pneg %p122
      %p407 = pneg %p119
      %p408 = pneg %p143
      %p409 = pneg %p140
      %p410 = pneg %p164
      %p411 = pneg %p161
      %p412 = pneg %p185
      %p413 = pneg %p182
      %p414 = pneg %p206
      %p415 = pneg %p203
      %p416 = pneg %p227
      %p417 = pneg %p224
      %p418 = pneg %p248
      %p419 = pneg %p245
      %p420 = pneg %p274
      %p421 = pneg %p271
      %s422 = smul.u32 2, %s23
      %p423 = scmp.lt.s32.totalorder %s422, 15
      %s424 = scalar_select %p423, %s422, 15
      %s425 = smul.addr %s424, 8
      %s426 = scalar_lea.vmem %s10, %s425
      %p427 = pneg %p300
      %p428 = pneg %p297
      %s429 = smul.u32 2, %s23
      %p430 = scmp.lt.s32.totalorder %s429, 15
      %s431 = scalar_select %p430, %s429, 15
      %s432 = smul.addr %s431, 8
      %s433 = scalar_lea.vmem %s11, %s432
      %s434 = smul.u32 2, %s23
      %p435 = scmp.lt.s32.totalorder %s434, 15
      %s436 = scalar_select %p435, %s434, 15
      %s437 = smul.addr %s436, 8
      %s438 = scalar_lea.vmem %s0, %s437
      %s439 = smul.u32 2, %s23
      %s440 = smul.u32 2, %s23
      %p441 = scmp.lt.s32.totalorder %s440, 15
      %s442 = scalar_select %p441, %s440, 15
      %s443 = smul.addr %s442, 8
      %s444 = scalar_lea.vmem %s1, %s443
      %s445 = smul.u32 2, %s23
      %s446 = smul.u32 2, %s23
      %p447 = scmp.lt.s32.totalorder %s446, 15
      %s448 = scalar_select %p447, %s446, 15
      %s449 = smul.addr %s448, 8
      %s450 = scalar_lea.vmem %s2, %s449
      %s451 = smul.u32 2, %s23
      %s452 = smul.u32 2, %s23
      %p453 = scmp.lt.s32.totalorder %s452, 15
      %s454 = scalar_select %p453, %s452, 15
      %s455 = smul.addr %s454, 8
      %s456 = scalar_lea.vmem %s3, %s455
      %s457 = smul.u32 2, %s23
      %s458 = smul.u32 2, %s23
      %p459 = scmp.lt.s32.totalorder %s458, 15
      %s460 = scalar_select %p459, %s458, 15
      %s461 = smul.addr %s460, 8
      %s462 = scalar_lea.vmem %s10, %s461
      %s463 = smul.u32 2, %s23
      %s464 = smul.u32 2, %s23
      %p465 = scmp.lt.s32.totalorder %s464, 15
      %s466 = scalar_select %p465, %s464, 15
      %s467 = smul.addr %s466, 8
      %s468 = scalar_lea.vmem %s11, %s467
      %s469 = smul.u32 2, %s23
      %v470 = vld [vmem:[%s4] sm:$0xff]
      %v471 = vld [vmem:[%s4 + $0x8] sm:$0xff]
      %v472 = vld [vmem:[%s4 + $0x10] sm:$0xff]
      %v473 = vld [vmem:[%s4 + $0x18] sm:$0xff]
      %v474 = vld [vmem:[%s438] sm:$0xff]
      %v475 = vld [vmem:[%s438 + $0x8] sm:$0xff]
      %v476 = vld [vmem:[%s5] sm:$0xff]
      %v477 = vld [vmem:[%s5 + $0x8] sm:$0xff]
      %v478 = vld [vmem:[%s5 + $0x10] sm:$0xff]
      %v479 = vld [vmem:[%s5 + $0x18] sm:$0xff]
      %v480 = vld [vmem:[%s444] sm:$0xff]
      %v481 = vld [vmem:[%s444 + $0x8] sm:$0xff]
      %vm482 = vcmask 130048
      %v484 = vsel %vm482, %v476, 0
      %v487 = vsel %vm482, %v477, 0
      %v490 = vsel %vm482, %v478, 0
      %v493 = vsel %vm482, %v479, 0
      %495 = vmatprep.subr.mxu0 0.0
      %496 = vmatpush1.msra.mxu0 %v480
      %497 = vmatprep.subr.mxu0 0.0
      %498 = vmatpush1.msra.mxu0 %v481
      %499 = vmatprep.subr.mxu0 0.0
      %500 = vmatpush1.msra.mxu0 0.0
      %501 = vmatprep.subr.mxu0 0.0
      %502 = vmatpush1.msra.mxu0 0.0
      %503 = vmatprep.subr.mxu0 0.0
      %504 = vmatpush1.msra.mxu0 0.0
      %505 = vmatprep.subr.mxu0 0.0
      %506 = vmatpush1.msra.mxu0 0.0
      %507 = vmatprep.subr.mxu0 0.0
      %508 = vmatpush1.msra.mxu0 0.0
      %509 = vmatprep.subr.mxu0 0.0
      %510 = vmatpush1.msra.mxu0 0.0
      %511 = vmatprep.subr.mxu0 0.0
      %512 = vmatpush1.msra.mxu0 0.0
      %513 = vmatprep.subr.mxu0 0.0
      %514 = vmatpush1.msra.mxu0 0.0
      %515 = vmatprep.subr.mxu0 0.0
      %516 = vmatpush1.msra.mxu0 0.0
      %517 = vmatprep.subr.mxu0 0.0
      %518 = vmatpush1.msra.mxu0 0.0
      %519 = vmatprep.subr.mxu0 0.0
      %520 = vmatpush1.msra.mxu0 0.0
      %521 = vmatprep.subr.mxu0 0.0
      %522 = vmatpush1.msra.mxu0 0.0
      %523 = vmatprep.subr.mxu0 0.0
      %524 = vmatpush1.msra.mxu0 0.0
      %525 = vmatprep.subr.mxu0 0.0
      %526 = vmatpush1.msra.mxu0 0.0
      %527 = vmatprep.subr.mxu0 0.0
      %528 = vmatpush1.msra.mxu0 0.0
      %529 = vmatprep.subr.mxu0 0.0
      %530 = vmatpush1.msra.mxu0 0.0
      %531 = vmatprep.subr.mxu0 0.0
      %532 = vmatpush1.msra.mxu0 0.0
      %533 = vmatprep.subr.mxu0 0.0
      %534 = vmatpush1.msra.mxu0 0.0
      %535 = vmatprep.subr.mxu0 0.0
      %536 = vmatpush1.msra.mxu0 0.0
      %537 = vmatprep.subr.mxu0 0.0
      %538 = vmatpush1.msra.mxu0 0.0
      %539 = vmatprep.subr.mxu0 0.0
      %540 = vmatpush1.msra.mxu0 0.0
      %541 = vmatprep.subr.mxu0 0.0
      %542 = vmatpush1.msra.mxu0 0.0
      %543 = vmatprep.subr.mxu0 0.0
      %544 = vmatpush1.msra.mxu0 0.0
      %545 = vmatprep.subr.mxu0 0.0
      %546 = vmatpush1.msra.mxu0 0.0
      %547 = vmatprep.subr.mxu0 0.0
      %548 = vmatpush1.msra.mxu0 0.0
      %549 = vmatprep.subr.mxu0 0.0
      %550 = vmatpush1.msra.mxu0 0.0
      %551 = vmatprep.subr.mxu0 0.0
      %552 = vmatpush1.msra.mxu0 0.0
      %553 = vmatprep.subr.mxu0 0.0
      %554 = vmatpush1.msra.mxu0 0.0
      %555 = vmatprep.subr.mxu0 0.0
      %556 = vmatpush1.msra.mxu0 0.0
      %557 = vmatprep.subr.mxu0 0.0
      %558 = vmatpush1.msra.mxu0 0.0
      %559 = vmatprep.mubr.f32.mxu0 0.0
      %560 = vmatmul.mubr.f32.gmra.mrb[0].mxu0 %v484
      %v561 = vpop.f32.mrb[0].mxu0
      %v562 = vadd.f32 0.0, %v561
      %v563 = vpop.f32.mrb[0].mxu0
      %564 = vmatprep.mubr.f32.mxu0 0.0
      %565 = vmatmul.mubr.f32.gmra.mrb[0].mxu0 %v487
      %v566 = vpop.f32.mrb[0].mxu0
      %v567 = vadd.f32 0.0, %v566
      %v568 = vpop.f32.mrb[0].mxu0
      %569 = vmatprep.mubr.f32.mxu0 0.0
      %570 = vmatmul.mubr.f32.gmra.mrb[0].mxu0 %v490
      %v571 = vpop.f32.mrb[0].mxu0
      %v572 = vadd.f32 0.0, %v571
      %v573 = vpop.f32.mrb[0].mxu0
      %574 = vmatprep.mubr.f32.mxu0 0.0
      %575 = vmatmul.mubr.f32.gmra.mrb[0].mxu0 %v493
      %v576 = vpop.f32.mrb[0].mxu0
      %v577 = vadd.f32 0.0, %v576
      %v578 = vpop.f32.mrb[0].mxu0
      %579 = vdwg.mxu0
      %v581 = vsel %vm482, %v470, 0
      %v584 = vsel %vm482, %v471, 0
      %v587 = vsel %vm482, %v472, 0
      %v590 = vsel %vm482, %v473, 0
      %592 = vmatprep.subr.mxu0 0.0
      %593 = vmatpush1.msra.mxu0 %v474
      %594 = vmatprep.subr.mxu0 0.0
      %595 = vmatpush1.msra.mxu0 %v475
      %596 = vmatprep.subr.mxu0 0.0
      %597 = vmatpush1.msra.mxu0 0.0
      %598 = vmatprep.subr.mxu0 0.0
      %599 = vmatpush1.msra.mxu0 0.0
      %600 = vmatprep.subr.mxu0 0.0
      %601 = vmatpush1.msra.mxu0 0.0
      %602 = vmatprep.subr.mxu0 0.0
      %603 = vmatpush1.msra.mxu0 0.0
      %604 = vmatprep.subr.mxu0 0.0
      %605 = vmatpush1.msra.mxu0 0.0
      %606 = vmatprep.subr.mxu0 0.0
      %607 = vmatpush1.msra.mxu0 0.0
      %608 = vmatprep.subr.mxu0 0.0
      %609 = vmatpush1.msra.mxu0 0.0
      %610 = vmatprep.subr.mxu0 0.0
      %611 = vmatpush1.msra.mxu0 0.0
      %612 = vmatprep.subr.mxu0 0.0
      %613 = vmatpush1.msra.mxu0 0.0
      %614 = vmatprep.subr.mxu0 0.0
      %615 = vmatpush1.msra.mxu0 0.0
      %616 = vmatprep.subr.mxu0 0.0
      %617 = vmatpush1.msra.mxu0 0.0
      %618 = vmatprep.subr.mxu0 0.0
      %619 = vmatpush1.msra.mxu0 0.0
      %620 = vmatprep.subr.mxu0 0.0
      %621 = vmatpush1.msra.mxu0 0.0
      %622 = vmatprep.subr.mxu0 0.0
      %623 = vmatpush1.msra.mxu0 0.0
      %624 = vmatprep.subr.mxu0 0.0
      %625 = vmatpush1.msra.mxu0 0.0
      %626 = vmatprep.subr.mxu0 0.0
      %627 = vmatpush1.msra.mxu0 0.0
      %628 = vmatprep.subr.mxu0 0.0
      %629 = vmatpush1.msra.mxu0 0.0
      %630 = vmatprep.subr.mxu0 0.0
      %631 = vmatpush1.msra.mxu0 0.0
      %632 = vmatprep.subr.mxu0 0.0
      %633 = vmatpush1.msra.mxu0 0.0
      %634 = vmatprep.subr.mxu0 0.0
      %635 = vmatpush1.msra.mxu0 0.0
      %636 = vmatprep.subr.mxu0 0.0
      %637 = vmatpush1.msra.mxu0 0.0
      %638 = vmatprep.subr.mxu0 0.0
      %639 = vmatpush1.msra.mxu0 0.0
      %640 = vmatprep.subr.mxu0 0.0
      %641 = vmatpush1.msra.mxu0 0.0
      %642 = vmatprep.subr.mxu0 0.0
      %643 = vmatpush1.msra.mxu0 0.0
      %644 = vmatprep.subr.mxu0 0.0
      %645 = vmatpush1.msra.mxu0 0.0
      %646 = vmatprep.subr.mxu0 0.0
      %647 = vmatpush1.msra.mxu0 0.0
      %648 = vmatprep.subr.mxu0 0.0
      %649 = vmatpush1.msra.mxu0 0.0
      %650 = vmatprep.subr.mxu0 0.0
      %651 = vmatpush1.msra.mxu0 0.0
      %652 = vmatprep.subr.mxu0 0.0
      %653 = vmatpush1.msra.mxu0 0.0
      %654 = vmatprep.subr.mxu0 0.0
      %655 = vmatpush1.msra.mxu0 0.0
      %656 = vmatprep.mubr.f32.mxu0 0.0
      %657 = vmatmul.mubr.f32.gmra.mrb[0].mxu0 %v581
      %v658 = vpop.f32.mrb[0].mxu0
      %v659 = vadd.f32 %v562, %v658
      %v660 = vpop.f32.mrb[0].mxu0
      %661 = vmatprep.mubr.f32.mxu0 0.0
      %662 = vmatmul.mubr.f32.gmra.mrb[0].mxu0 %v584
      %v663 = vpop.f32.mrb[0].mxu0
      %v664 = vadd.f32 %v567, %v663
      %v665 = vpop.f32.mrb[0].mxu0
      %666 = vmatprep.mubr.f32.mxu0 0.0
      %667 = vmatmul.mubr.f32.gmra.mrb[0].mxu0 %v587
      %v668 = vpop.f32.mrb[0].mxu0
      %v669 = vadd.f32 %v572, %v668
      %v670 = vpop.f32.mrb[0].mxu0
      %671 = vmatprep.mubr.f32.mxu0 0.0
      %672 = vmatmul.mubr.f32.gmra.mrb[0].mxu0 %v590
      %v673 = vpop.f32.mrb[0].mxu0
      %v674 = vadd.f32 %v577, %v673
      %v675 = vpop.f32.mrb[0].mxu0
      %676 = vdwg.mxu0
      %v677 = vld [vmem:[%s6] sm:$0xff]
      %v678 = vld [vmem:[%s6 + $0x8] sm:$0xff]
      %v680 = vsel %vm482, %v659, 0
      %v683 = vsel %vm482, %v664, 0
      %v686 = vsel %vm482, %v669, 0
      %v689 = vsel %vm482, %v674, 0
      %691 = vmatprep.subr.mxu0 0.0
      %692 = vmatpush1.msra.mxu0 %v677
      %693 = vmatprep.subr.mxu0 0.0
      %694 = vmatpush1.msra.mxu0 %v678
      %695 = vmatprep.subr.mxu0 0.0
      %696 = vmatpush1.msra.mxu0 0.0
      %697 = vmatprep.subr.mxu0 0.0
      %698 = vmatpush1.msra.mxu0 0.0
      %699 = vmatprep.subr.mxu0 0.0
      %700 = vmatpush1.msra.mxu0 0.0
      %701 = vmatprep.subr.mxu0 0.0
      %702 = vmatpush1.msra.mxu0 0.0
      %703 = vmatprep.subr.mxu0 0.0
      %704 = vmatpush1.msra.mxu0 0.0
      %705 = vmatprep.subr.mxu0 0.0
      %706 = vmatpush1.msra.mxu0 0.0
      %707 = vmatprep.subr.mxu0 0.0
      %708 = vmatpush1.msra.mxu0 0.0
      %709 = vmatprep.subr.mxu0 0.0
      %710 = vmatpush1.msra.mxu0 0.0
      %711 = vmatprep.subr.mxu0 0.0
      %712 = vmatpush1.msra.mxu0 0.0
      %713 = vmatprep.subr.mxu0 0.0
      %714 = vmatpush1.msra.mxu0 0.0
      %715 = vmatprep.subr.mxu0 0.0
      %716 = vmatpush1.msra.mxu0 0.0
      %717 = vmatprep.subr.mxu0 0.0
      %718 = vmatpush1.msra.mxu0 0.0
      %719 = vmatprep.subr.mxu0 0.0
      %720 = vmatpush1.msra.mxu0 0.0
      %721 = vmatprep.subr.mxu0 0.0
      %722 = vmatpush1.msra.mxu0 0.0
      %723 = vmatprep.subr.mxu0 0.0
      %724 = vmatpush1.msra.mxu0 0.0
      %725 = vmatprep.subr.mxu0 0.0
      %726 = vmatpush1.msra.mxu0 0.0
      %727 = vmatprep.subr.mxu0 0.0
      %728 = vmatpush1.msra.mxu0 0.0
      %729 = vmatprep.subr.mxu0 0.0
      %730 = vmatpush1.msra.mxu0 0.0
      %731 = vmatprep.subr.mxu0 0.0
      %732 = vmatpush1.msra.mxu0 0.0
      %733 = vmatprep.subr.mxu0 0.0
      %734 = vmatpush1.msra.mxu0 0.0
      %735 = vmatprep.subr.mxu0 0.0
      %736 = vmatpush1.msra.mxu0 0.0
      %737 = vmatprep.subr.mxu0 0.0
      %738 = vmatpush1.msra.mxu0 0.0
      %739 = vmatprep.subr.mxu0 0.0
      %740 = vmatpush1.msra.mxu0 0.0
      %741 = vmatprep.subr.mxu0 0.0
      %742 = vmatpush1.msra.mxu0 0.0
      %743 = vmatprep.subr.mxu0 0.0
      %744 = vmatpush1.msra.mxu0 0.0
      %745 = vmatprep.subr.mxu0 0.0
      %746 = vmatpush1.msra.mxu0 0.0
      %747 = vmatprep.subr.mxu0 0.0
      %748 = vmatpush1.msra.mxu0 0.0
      %749 = vmatprep.subr.mxu0 0.0
      %750 = vmatpush1.msra.mxu0 0.0
      %751 = vmatprep.subr.mxu0 0.0
      %752 = vmatpush1.msra.mxu0 0.0
      %753 = vmatprep.subr.mxu0 0.0
      %754 = vmatpush1.msra.mxu0 0.0
      %755 = vmatprep.mubr.f32.mxu0 0.0
      %756 = vmatmul.mubr.f32.gmra.mrb[0].mxu0 %v680
      %v757 = vpop.f32.mrb[0].mxu0
      %v758 = vadd.f32 0.0, %v757
      %v759 = vpop.f32.mrb[0].mxu0
      %760 = vmatprep.mubr.f32.mxu0 0.0
      %761 = vmatmul.mubr.f32.gmra.mrb[0].mxu0 %v683
      %v762 = vpop.f32.mrb[0].mxu0
      %v763 = vadd.f32 0.0, %v762
      %v764 = vpop.f32.mrb[0].mxu0
      %765 = vmatprep.mubr.f32.mxu0 0.0
      %766 = vmatmul.mubr.f32.gmra.mrb[0].mxu0 %v686
      %v767 = vpop.f32.mrb[0].mxu0
      %v768 = vadd.f32 0.0, %v767
      %v769 = vpop.f32.mrb[0].mxu0
      %770 = vmatprep.mubr.f32.mxu0 0.0
      %771 = vmatmul.mubr.f32.gmra.mrb[0].mxu0 %v689
      %v772 = vpop.f32.mrb[0].mxu0
      %v773 = vadd.f32 0.0, %v772
      %v774 = vpop.f32.mrb[0].mxu0
      %775 = vdwg.mxu0
      %778 = vrot.lane.b32.xlu0 %v768, 112
      %v779 = vpop.permute.xlu0 %778
      %780 = vrot.lane.b32.xlu0 %v773, 112
      %v781 = vpop.permute.xlu0 %780
      %v784 = vsub.f32 %v758, %v779
      %v785 = vsub.f32 %v763, %v781
      %786 = vrot.lane.b32.xlu0 %v768, 16
      %v787 = vpop.permute.xlu0 %786
      %788 = vrot.lane.b32.xlu0 %v773, 16
      %v789 = vpop.permute.xlu0 %788
      %v792 = vadd.f32 %v758, %v787
      %v793 = vadd.f32 %v763, %v789
      %v794 = vld [vmem:[%s8] sm:$0xff]
      %v795 = vld [vmem:[%s8 + $0x8] sm:$0xff]
      %v796 = vld [vmem:[%s9] sm:$0xff]
      %v797 = vld [vmem:[%s9 + $0x8] sm:$0xff]
      %v798 = vld [vmem:[%s450] sm:$0xff]
      %v799 = vld [vmem:[%s450 + $0x8] sm:$0xff]
      %v800 = vmul.f32 %v794, %v798
      %v801 = vmul.f32 %v795, %v799
      %v802 = vmul.f32 %v796, %v784
      %v803 = vmul.f32 %v797, %v785
      %v804 = vsub.f32 %v800, %v802
      %v805 = vsub.f32 %v801, %v803
      %808 = vrot.lane.b32.xlu0 %v792, 112
      %v809 = vpop.permute.xlu0 %808
      %810 = vrot.lane.b32.xlu0 %v793, 112
      %v811 = vpop.permute.xlu0 %810
      %v814 = vmul.f32 %v796, %v809
      %v815 = vmul.f32 %v797, %v811
      %v816 = vld [vmem:[%s456] sm:$0xff]
      %v817 = vld [vmem:[%s456 + $0x8] sm:$0xff]
      %v818 = vmul.f32 %v794, %v816
      %v819 = vmul.f32 %v795, %v817
      %v820 = vsub.f32 %v814, %v818
      %v821 = vsub.f32 %v815, %v819
      %822 = vmatprep.subr.mxu0 0.0
      %823 = vmatpush1.msra.mxu0 %v820
      %824 = vmatprep.subr.mxu0 0.0
      %825 = vmatpush1.msra.mxu0 %v821
      %826 = vmatprep.subr.mxu0 0.0
      %827 = vmatpush1.msra.mxu0 0.0
      %828 = vmatprep.subr.mxu0 0.0
      %829 = vmatpush1.msra.mxu0 0.0
      %830 = vmatprep.subr.mxu0 0.0
      %831 = vmatpush1.msra.mxu0 0.0
      %832 = vmatprep.subr.mxu0 0.0
      %833 = vmatpush1.msra.mxu0 0.0
      %834 = vmatprep.subr.mxu0 0.0
      %835 = vmatpush1.msra.mxu0 0.0
      %836 = vmatprep.subr.mxu0 0.0
      %837 = vmatpush1.msra.mxu0 0.0
      %838 = vmatprep.subr.mxu0 0.0
      %839 = vmatpush1.msra.mxu0 0.0
      %840 = vmatprep.subr.mxu0 0.0
      %841 = vmatpush1.msra.mxu0 0.0
      %842 = vmatprep.subr.mxu0 0.0
      %843 = vmatpush1.msra.mxu0 0.0
      %844 = vmatprep.subr.mxu0 0.0
      %845 = vmatpush1.msra.mxu0 0.0
      %846 = vmatprep.subr.mxu0 0.0
      %847 = vmatpush1.msra.mxu0 0.0
      %848 = vmatprep.subr.mxu0 0.0
      %849 = vmatpush1.msra.mxu0 0.0
      %850 = vmatprep.subr.mxu0 0.0
      %851 = vmatpush1.msra.mxu0 0.0
      %852 = vmatprep.subr.mxu0 0.0
      %853 = vmatpush1.msra.mxu0 0.0
      %854 = vmatprep.subr.mxu0 0.0
      %855 = vmatpush1.msra.mxu0 0.0
      %856 = vmatprep.subr.mxu0 0.0
      %857 = vmatpush1.msra.mxu0 0.0
      %858 = vmatprep.subr.mxu0 0.0
      %859 = vmatpush1.msra.mxu0 0.0
      %860 = vmatprep.subr.mxu0 0.0
      %861 = vmatpush1.msra.mxu0 0.0
      %862 = vmatprep.subr.mxu0 0.0
      %863 = vmatpush1.msra.mxu0 0.0
      %864 = vmatprep.subr.mxu0 0.0
      %865 = vmatpush1.msra.mxu0 0.0
      %866 = vmatprep.subr.mxu0 0.0
      %867 = vmatpush1.msra.mxu0 0.0
      %868 = vmatprep.subr.mxu0 0.0
      %869 = vmatpush1.msra.mxu0 0.0
      %870 = vmatprep.subr.mxu0 0.0
      %871 = vmatpush1.msra.mxu0 0.0
      %872 = vmatprep.subr.mxu0 0.0
      %873 = vmatpush1.msra.mxu0 0.0
      %874 = vmatprep.subr.mxu0 0.0
      %875 = vmatpush1.msra.mxu0 0.0
      %876 = vmatprep.subr.mxu0 0.0
      %877 = vmatpush1.msra.mxu0 0.0
      %878 = vmatprep.subr.mxu0 0.0
      %879 = vmatpush1.msra.mxu0 0.0
      %880 = vmatprep.subr.mxu0 0.0
      %881 = vmatpush1.msra.mxu0 0.0
      %882 = vmatprep.subr.mxu0 0.0
      %883 = vmatpush1.msra.mxu0 0.0
      %884 = vmatprep.subr.mxu0 0.0
      %885 = vmatpush1.msra.mxu0 0.0
      %886 = vmatprep.mubr.f32.mxu0 0.0
      %887 = vmatmul.mubr.f32.gmra.mrb[0].mxu0 %v484
      %v888 = vpop.f32.mrb[0].mxu0
      %v889 = vadd.f32 0.0, %v888
      %v890 = vpop.f32.mrb[0].mxu0
      %891 = vmatprep.mubr.f32.mxu0 0.0
      %892 = vmatmul.mubr.f32.gmra.mrb[0].mxu0 %v487
      %v893 = vpop.f32.mrb[0].mxu0
      %v894 = vadd.f32 0.0, %v893
      %v895 = vpop.f32.mrb[0].mxu0
      %896 = vmatprep.mubr.f32.mxu0 0.0
      %897 = vmatmul.mubr.f32.gmra.mrb[0].mxu0 %v490
      %v898 = vpop.f32.mrb[0].mxu0
      %v899 = vadd.f32 0.0, %v898
      %v900 = vpop.f32.mrb[0].mxu0
      %901 = vmatprep.mubr.f32.mxu0 0.0
      %902 = vmatmul.mubr.f32.gmra.mrb[0].mxu0 %v493
      %v903 = vpop.f32.mrb[0].mxu0
      %v904 = vadd.f32 0.0, %v903
      %v905 = vpop.f32.mrb[0].mxu0
      %906 = vdwg.mxu0
      %907 = vmatprep.subr.mxu0 0.0
      %908 = vmatpush1.msra.mxu0 %v804
      %909 = vmatprep.subr.mxu0 0.0
      %910 = vmatpush1.msra.mxu0 %v805
      %911 = vmatprep.subr.mxu0 0.0
      %912 = vmatpush1.msra.mxu0 0.0
      %913 = vmatprep.subr.mxu0 0.0
      %914 = vmatpush1.msra.mxu0 0.0
      %915 = vmatprep.subr.mxu0 0.0
      %916 = vmatpush1.msra.mxu0 0.0
      %917 = vmatprep.subr.mxu0 0.0
      %918 = vmatpush1.msra.mxu0 0.0
      %919 = vmatprep.subr.mxu0 0.0
      %920 = vmatpush1.msra.mxu0 0.0
      %921 = vmatprep.subr.mxu0 0.0
      %922 = vmatpush1.msra.mxu0 0.0
      %923 = vmatprep.subr.mxu0 0.0
      %924 = vmatpush1.msra.mxu0 0.0
      %925 = vmatprep.subr.mxu0 0.0
      %926 = vmatpush1.msra.mxu0 0.0
      %927 = vmatprep.subr.mxu0 0.0
      %928 = vmatpush1.msra.mxu0 0.0
      %929 = vmatprep.subr.mxu0 0.0
      %930 = vmatpush1.msra.mxu0 0.0
      %931 = vmatprep.subr.mxu0 0.0
      %932 = vmatpush1.msra.mxu0 0.0
      %933 = vmatprep.subr.mxu0 0.0
      %934 = vmatpush1.msra.mxu0 0.0
      %935 = vmatprep.subr.mxu0 0.0
      %936 = vmatpush1.msra.mxu0 0.0
      %937 = vmatprep.subr.mxu0 0.0
      %938 = vmatpush1.msra.mxu0 0.0
      %939 = vmatprep.subr.mxu0 0.0
      %940 = vmatpush1.msra.mxu0 0.0
      %941 = vmatprep.subr.mxu0 0.0
      %942 = vmatpush1.msra.mxu0 0.0
      %943 = vmatprep.subr.mxu0 0.0
      %944 = vmatpush1.msra.mxu0 0.0
      %945 = vmatprep.subr.mxu0 0.0
      %946 = vmatpush1.msra.mxu0 0.0
      %947 = vmatprep.subr.mxu0 0.0
      %948 = vmatpush1.msra.mxu0 0.0
      %949 = vmatprep.subr.mxu0 0.0
      %950 = vmatpush1.msra.mxu0 0.0
      %951 = vmatprep.subr.mxu0 0.0
      %952 = vmatpush1.msra.mxu0 0.0
      %953 = vmatprep.subr.mxu0 0.0
      %954 = vmatpush1.msra.mxu0 0.0
      %955 = vmatprep.subr.mxu0 0.0
      %956 = vmatpush1.msra.mxu0 0.0
      %957 = vmatprep.subr.mxu0 0.0
      %958 = vmatpush1.msra.mxu0 0.0
      %959 = vmatprep.subr.mxu0 0.0
      %960 = vmatpush1.msra.mxu0 0.0
      %961 = vmatprep.subr.mxu0 0.0
      %962 = vmatpush1.msra.mxu0 0.0
      %963 = vmatprep.subr.mxu0 0.0
      %964 = vmatpush1.msra.mxu0 0.0
      %965 = vmatprep.subr.mxu0 0.0
      %966 = vmatpush1.msra.mxu0 0.0
      %967 = vmatprep.subr.mxu0 0.0
      %968 = vmatpush1.msra.mxu0 0.0
      %969 = vmatprep.subr.mxu0 0.0
      %970 = vmatpush1.msra.mxu0 0.0
      %971 = vmatprep.mubr.f32.mxu0 0.0
      %972 = vmatmul.mubr.f32.gmra.mrb[0].mxu0 %v581
      %v973 = vpop.f32.mrb[0].mxu0
      %v974 = vadd.f32 %v889, %v973
      %v975 = vpop.f32.mrb[0].mxu0
      %976 = vmatprep.mubr.f32.mxu0 0.0
      %977 = vmatmul.mubr.f32.gmra.mrb[0].mxu0 %v584
      %v978 = vpop.f32.mrb[0].mxu0
      %v979 = vadd.f32 %v894, %v978
      %v980 = vpop.f32.mrb[0].mxu0
      %981 = vmatprep.mubr.f32.mxu0 0.0
      %982 = vmatmul.mubr.f32.gmra.mrb[0].mxu0 %v587
      %v983 = vpop.f32.mrb[0].mxu0
      %v984 = vadd.f32 %v899, %v983
      %v985 = vpop.f32.mrb[0].mxu0
      %986 = vmatprep.mubr.f32.mxu0 0.0
      %987 = vmatmul.mubr.f32.gmra.mrb[0].mxu0 %v590
      %v988 = vpop.f32.mrb[0].mxu0
      %v989 = vadd.f32 %v904, %v988
      %v990 = vpop.f32.mrb[0].mxu0
      %991 = vdwg.mxu0
      %v992 = vld [vmem:[%s7] sm:$0xff]
      %v993 = vld [vmem:[%s7 + $0x8] sm:$0xff]
      %v995 = vsel %vm482, %v974, 0
      %v998 = vsel %vm482, %v979, 0
      %v1001 = vsel %vm482, %v984, 0
      %v1004 = vsel %vm482, %v989, 0
      %1006 = vmatprep.subr.mxu0 0.0
      %1007 = vmatpush1.msra.mxu0 %v992
      %1008 = vmatprep.subr.mxu0 0.0
      %1009 = vmatpush1.msra.mxu0 %v993
      %1010 = vmatprep.subr.mxu0 0.0
      %1011 = vmatpush1.msra.mxu0 0.0
      %1012 = vmatprep.subr.mxu0 0.0
      %1013 = vmatpush1.msra.mxu0 0.0
      %1014 = vmatprep.subr.mxu0 0.0
      %1015 = vmatpush1.msra.mxu0 0.0
      %1016 = vmatprep.subr.mxu0 0.0
      %1017 = vmatpush1.msra.mxu0 0.0
      %1018 = vmatprep.subr.mxu0 0.0
      %1019 = vmatpush1.msra.mxu0 0.0
      %1020 = vmatprep.subr.mxu0 0.0
      %1021 = vmatpush1.msra.mxu0 0.0
      %1022 = vmatprep.subr.mxu0 0.0
      %1023 = vmatpush1.msra.mxu0 0.0
      %1024 = vmatprep.subr.mxu0 0.0
      %1025 = vmatpush1.msra.mxu0 0.0
      %1026 = vmatprep.subr.mxu0 0.0
      %1027 = vmatpush1.msra.mxu0 0.0
      %1028 = vmatprep.subr.mxu0 0.0
      %1029 = vmatpush1.msra.mxu0 0.0
      %1030 = vmatprep.subr.mxu0 0.0
      %1031 = vmatpush1.msra.mxu0 0.0
      %1032 = vmatprep.subr.mxu0 0.0
      %1033 = vmatpush1.msra.mxu0 0.0
      %1034 = vmatprep.subr.mxu0 0.0
      %1035 = vmatpush1.msra.mxu0 0.0
      %1036 = vmatprep.subr.mxu0 0.0
      %1037 = vmatpush1.msra.mxu0 0.0
      %1038 = vmatprep.subr.mxu0 0.0
      %1039 = vmatpush1.msra.mxu0 0.0
      %1040 = vmatprep.subr.mxu0 0.0
      %1041 = vmatpush1.msra.mxu0 0.0
      %1042 = vmatprep.subr.mxu0 0.0
      %1043 = vmatpush1.msra.mxu0 0.0
      %1044 = vmatprep.subr.mxu0 0.0
      %1045 = vmatpush1.msra.mxu0 0.0
      %1046 = vmatprep.subr.mxu0 0.0
      %1047 = vmatpush1.msra.mxu0 0.0
      %1048 = vmatprep.subr.mxu0 0.0
      %1049 = vmatpush1.msra.mxu0 0.0
      %1050 = vmatprep.subr.mxu0 0.0
      %1051 = vmatpush1.msra.mxu0 0.0
      %1052 = vmatprep.subr.mxu0 0.0
      %1053 = vmatpush1.msra.mxu0 0.0
      %1054 = vmatprep.subr.mxu0 0.0
      %1055 = vmatpush1.msra.mxu0 0.0
      %1056 = vmatprep.subr.mxu0 0.0
      %1057 = vmatpush1.msra.mxu0 0.0
      %1058 = vmatprep.subr.mxu0 0.0
      %1059 = vmatpush1.msra.mxu0 0.0
      %1060 = vmatprep.subr.mxu0 0.0
      %1061 = vmatpush1.msra.mxu0 0.0
      %1062 = vmatprep.subr.mxu0 0.0
      %1063 = vmatpush1.msra.mxu0 0.0
      %1064 = vmatprep.subr.mxu0 0.0
      %1065 = vmatpush1.msra.mxu0 0.0
      %1066 = vmatprep.subr.mxu0 0.0
      %1067 = vmatpush1.msra.mxu0 0.0
      %1068 = vmatprep.subr.mxu0 0.0
      %1069 = vmatpush1.msra.mxu0 0.0
      %1070 = vmatprep.mubr.f32.mxu0 0.0
      %1071 = vmatmul.mubr.f32.gmra.mrb[0].mxu0 %v995
      %v1072 = vpop.f32.mrb[0].mxu0
      %v1073 = vadd.f32 0.0, %v1072
      %v1074 = vpop.f32.mrb[0].mxu0
      %1075 = vmatprep.mubr.f32.mxu0 0.0
      %1076 = vmatmul.mubr.f32.gmra.mrb[0].mxu0 %v998
      %v1077 = vpop.f32.mrb[0].mxu0
      %v1078 = vadd.f32 0.0, %v1077
      %v1079 = vpop.f32.mrb[0].mxu0
      %1080 = vmatprep.mubr.f32.mxu0 0.0
      %1081 = vmatmul.mubr.f32.gmra.mrb[0].mxu0 %v1001
      %v1082 = vpop.f32.mrb[0].mxu0
      %v1083 = vadd.f32 0.0, %v1082
      %v1084 = vpop.f32.mrb[0].mxu0
      %1085 = vmatprep.mubr.f32.mxu0 0.0
      %1086 = vmatmul.mubr.f32.gmra.mrb[0].mxu0 %v1004
      %v1087 = vpop.f32.mrb[0].mxu0
      %v1088 = vadd.f32 0.0, %v1087
      %v1089 = vpop.f32.mrb[0].mxu0
      %1090 = vdwg.mxu0
      %v1091 = vadd.f32 %v474, %v1073
      %v1092 = vadd.f32 %v475, %v1078
      %1095 = vrot.lane.b32.xlu0 %v1083, 112
      %v1096 = vpop.permute.xlu0 %1095
      %1097 = vrot.lane.b32.xlu0 %v1088, 112
      %v1098 = vpop.permute.xlu0 %1097
      %v1101 = vadd.f32 %v1091, %v1096
      %v1102 = vadd.f32 %v1092, %v1098
      %1103 = vst.msk [vmem:[%s462] sm:$0xff] %vm482, %v1101
      %1104 = vst.msk [vmem:[%s462 + $0x8] sm:$0xff] %vm482, %v1102
      %v1105 = vld [vmem:[%s444] sm:$0xff]
      %v1106 = vld [vmem:[%s444 + $0x8] sm:$0xff]
      %1109 = vrot.lane.b32.xlu0 %v1073, 112
      %v1110 = vpop.permute.xlu0 %1109
      %1111 = vrot.lane.b32.xlu0 %v1078, 112
      %v1112 = vpop.permute.xlu0 %1111
      %v1115 = vadd.f32 %v1105, %v1110
      %v1116 = vadd.f32 %v1106, %v1112
      %v1117 = vsub.f32 %v1115, %v1083
      %v1118 = vsub.f32 %v1116, %v1088
      %1119 = vst.msk [vmem:[%s468] sm:$0xff] %vm482, %v1117
      %1120 = vst.msk [vmem:[%s468 + $0x8] sm:$0xff] %vm482, %v1118
      %s1121 = smul.u32 2, %s23
      %p1122 = scmp.lt.s32.totalorder %s1121, 15
      %s1123 = scalar_select %p1122, %s1121, 15
      %s1124 = smul.addr %s1123, 8
      %s1125 = scalar_lea.vmem %s10, %s1124
      %s1126 = smul.u32 2, %s23
      %p1127 = scmp.lt.s32.totalorder %s1126, 15
      %s1128 = scalar_select %p1127, %s1126, 15
      %s1129 = smul.addr %s1128, 8
      %s1130 = scalar_lea.vmem %s11, %s1129
      // Predicated region
      $region61: #{tpu_custom_call.1} parent=59 // pred_check
        %p1131 = pneg %p271
      $region62: #{tpu_custom_call.1} parent=59 // pred_check_branch
        %1133 = sbr.rel (%p1131) target = $region64
      $region63: #{tpu_custom_call.1} parent=59 // pred_region
        %s1134 = smul.u32 2, %s23
      $region64: #{tpu_custom_call.1} parent=59 // pred_fallthru
        _
      // Predicated region
      $region65: #{tpu_custom_call.1} parent=59 // pred_check
        %p1135 = pneg %p297
      $region66: #{tpu_custom_call.1} parent=59 // pred_check_branch
        %1137 = sbr.rel (%p1135) target = $region68
      $region67: #{tpu_custom_call.1} parent=59 // pred_region
        %s1138 = smul.u32 2, %s23
      $region68: #{tpu_custom_call.1} parent=59 // pred_fallthru
        _
    $region60: #{tpu_custom_call.1} parent=5 // pred_fallthru
      _
    %p1139 = scmp.le.s32.totalorder 2, %s18
    // Predicated region
    $region69: #{tpu_custom_call.1} parent=5 // pred_check
      %p1140 = pneg %p1139
    $region70: #{tpu_custom_call.1} parent=5 // pred_check_branch
      %1142 = sbr.rel (%p1140) target = $region72
    $region71: #{tpu_custom_call.1} parent=5 // pred_region
      %s1143 = ssub.s32 %s18, 2
      // Predicated region
      $region73: #{tpu_custom_call.1} parent=71 // pred_check
        %p1144 = pneg %p277
      $region74: #{tpu_custom_call.1} parent=71 // pred_check_branch
        %1146 = sbr.rel (%p1144) target = $region76
      $region75: #{tpu_custom_call.1} parent=71 // pred_region
        %s1147 = smul.u32 2, %s24
        %p1148 = scmp.lt.s32.totalorder %s1147, 15
        %s1149 = scalar_select %p1148, %s1147, 15
        %s1150 = smul.addr %s1149, 8
        %s1151 = scalar_lea.vmem %s10, %s1150
      $region76: #{tpu_custom_call.1} parent=71 // pred_fallthru
        _
      // Predicated region
      $region77: #{tpu_custom_call.1} parent=71 // pred_check
        %p1152 = pneg %p303
      $region78: #{tpu_custom_call.1} parent=71 // pred_check_branch
        %1154 = sbr.rel (%p1152) target = $region80
      $region79: #{tpu_custom_call.1} parent=71 // pred_region
        %s1155 = smul.u32 2, %s24
        %p1156 = scmp.lt.s32.totalorder %s1155, 15
        %s1157 = scalar_select %p1156, %s1155, 15
        %s1158 = smul.addr %s1157, 8
        %s1159 = scalar_lea.vmem %s11, %s1158
      $region80: #{tpu_custom_call.1} parent=71 // pred_fallthru
        _
    $region72: #{tpu_custom_call.1} parent=5 // pred_fallthru
      _
  $region6: #{tpu_custom_call.1} parent=0 // loop_footer
    %s22 = sadd.s32 1, %s18
  $region7: #{tpu_custom_call.1} parent=0 // loop_footer_branch
    %17 = sbr.rel target = $region3
  $region8: #{tpu_custom_call.1} parent=0 // loop_exit
    _

</llo_original>
